<compile_context>
chip_gen: v5e
topology: v5e:2x2
jax: 0.10.0
libtpu: 0.0.40
codegen_flags: <defaults>
</compile_context>

<pallas_src>
import functools

import jax
import jax.numpy as jnp
from jax.experimental import pallas as pl
from jax.experimental.pallas import tpu as pltpu


# ----------------------------------------------------------------------------
# Kernel: EAST-style box decoding (eastbox2rbox) + clip_to_image + validity mask
# on the gathered / selected proposals of all levels.
# ----------------------------------------------------------------------------
def _decode_select_kernel(reg_ref, aux_ref, out_ref, *, base_size, img_w, img_h,
                          score_thresh, min_size):
    # Blocks:
    #   reg_ref : (1, 5, TK) native dtype (bf16/f32) — 5 regression channels
    #   aux_ref : (1, 3, TK) f32 — [px, py, objectness_score] per selected cell
    #   out_ref : (1, 6, TK) f32 — [xc, yc, w, h, angle, masked_score]
    # All arithmetic is f32; narrow dtypes are cast right after the load so only the
    # HBM/DMA side benefits from the smaller element size (v5e has no bf16 VPU/EUP).
    px = aux_ref[0, 0:1, :]
    py = aux_ref[0, 1:2, :]
    score = aux_ref[0, 2:3, :]

    # Angle channel passes straight through; cos/sin go to the EUP (free slot).
    angle = reg_ref[0, 4:5, :].astype(jnp.float32)
    out_ref[0, 4:5, :] = angle
    ca = jnp.cos(angle)
    sa = jnp.sin(angle)

    # TODO(synk): exact eastbox2rbox geometry is not part of the provided snippet;
    # standard EAST edge-distance decoding (distances * base_size, center offset
    # rotated by the predicted angle) is used.
    d_top = reg_ref[0, 0:1, :].astype(jnp.float32) * base_size
    d_bottom = reg_ref[0, 2:3, :].astype(jnp.float32) * base_size
    h = d_top + d_bottom
    out_ref[0, 3:4, :] = h                                  # h
    dy = 0.5 * (d_bottom - d_top)

    d_right = reg_ref[0, 1:2, :].astype(jnp.float32) * base_size
    d_left = reg_ref[0, 3:4, :].astype(jnp.float32) * base_size
    w = d_left + d_right
    out_ref[0, 2:3, :] = w                                  # w
    dx = 0.5 * (d_right - d_left)

    xc = px + dx * ca - dy * sa
    yc = py + dx * sa + dy * ca
    # RBoxList.clip_to_image(remove_empty=False): clamp rbox centers to image extent.
    # TODO(synk): the reference RBoxList may also clip extents; centers-only kept.
    out_ref[0, 0:1, :] = jnp.clip(xc, 0.0, img_w - 1.0)
    out_ref[0, 1:2, :] = jnp.clip(yc, 0.0, img_h - 1.0)

    # score > score_thresh (inference path) + remove_small_boxes, fused here as a
    # -inf score mask emitted on the 6th channel.
    valid = (score > score_thresh) & (w >= min_size) & (h >= min_size)
    out_ref[0, 5:6, :] = jnp.where(valid, score, -jnp.inf)


def _round_up(x, m):
    return (x + m - 1) // m * m


def decode_selected(reg_sel, px, py, scores, *, base_size, image_size,
                    score_thresh, min_size):
    """Decode the already-selected proposals (all levels concatenated).

    reg_sel: (N, 5, K) native dtype; px/py/scores: (N, K) f32.
    Returns boxes (N, 5, K) f32 [xc,yc,w,h,angle] and masked scores (N, K) f32.
    """
    N, C, K = reg_sel.shape
    assert C == 5
    img_w, img_h = image_size

    # Pad K up to a lane-dense multiple of 128 (and of the tile size TK) so every
    # vector load/store in the kernel is a full, unmasked lane slab.
    K_pad = _round_up(max(K, 128), 128)
    TK = min(K_pad, 1024)
    K_pad = _round_up(K_pad, TK)
    pad = K_pad - K
    if pad:
        reg_sel = jnp.pad(reg_sel, ((0, 0), (0, 0), (0, pad)))
        px = jnp.pad(px, ((0, 0), (0, pad)))
        py = jnp.pad(py, ((0, 0), (0, pad)))
        scores = jnp.pad(scores, ((0, 0), (0, pad)), constant_values=-jnp.inf)
    aux = jnp.stack([px, py, scores], axis=1).astype(jnp.float32)      # (N, 3, K_pad)

    kern = functools.partial(
        _decode_select_kernel, base_size=float(base_size),
        img_w=float(img_w), img_h=float(img_h),
        score_thresh=float(score_thresh), min_size=float(min_size))

    # grid = (N, K_pad // TK), both parallel: keeps >=2 grid points for v7x's two
    # TensorCores even at small K.  Per-step working set is a few tens of KB, far
    # below any generation's scoped-VMEM limit.
    out = pl.pallas_call(
        kern,
        out_shape=jax.ShapeDtypeStruct((N, 6, K_pad), jnp.float32),
        grid=(N, K_pad // TK),
        in_specs=[pl.BlockSpec((1, 5, TK), lambda n, t: (n, 0, t)),
                  pl.BlockSpec((1, 3, TK), lambda n, t: (n, 0, t))],
        out_specs=pl.BlockSpec((1, 6, TK), lambda n, t: (n, 0, t)),
        compiler_params=pltpu.CompilerParams(
            dimension_semantics=("parallel", "parallel")),
    )(reg_sel, aux)

    boxes = out[:, :5, :K]            # (N, 5, K)
    masked_scores = out[:, 5, :K]     # (N, K)
    return boxes, masked_scores


# ----------------------------------------------------------------------------
# RPNPostProcessor (inference path), fixed-shape JAX/Pallas version
# ----------------------------------------------------------------------------
class RPNPostProcessorPallas:
    def __init__(self, pre_nms_top_n, post_nms_top_n, nms_thresh, min_size,
                 fpn_post_nms_top_n=None, base_size=640.0,
                 scale_stack=(0.25, 0.125, 0.0625, 0.03125, 0.015625),
                 score_thresh=0.1):
        self.pre_nms_top_n = pre_nms_top_n
        self.post_nms_top_n = post_nms_top_n
        self.nms_thresh = nms_thresh
        self.min_size = min_size
        self.base_size = base_size
        self.scale_stack = scale_stack
        self.score_thresh = score_thresh
        self.fpn_post_nms_top_n = (post_nms_top_n if fpn_post_nms_top_n is None
                                   else fpn_post_nms_top_n)

    def __call__(self, image_size, objectness_list, box_regression_list):
        # ---- Stage 1 (plain JAX, per level): pre-NMS top-k on objectness and gather
        # of the selected cells' regression channels.  Only pre_nms_top_n cells per
        # level are ever decoded — the full-map decode/writeback is gone.
        reg_parts, px_parts, py_parts, score_parts, level_sizes = [], [], [], [], []
        for o, b, scale in zip(objectness_list, box_regression_list, self.scale_stack):
            N, A, H, W = o.shape
            # Only the first 5 regression channels are used (single anchor per cell),
            # as in the reference box_regression_[:, :5].
            assert A == 1, "EAST-style RPN decoding assumes a single anchor per cell"
            # objectness.permute(0,2,3,1).reshape(N,-1): with A==1 this is a reshape.
            obj = o.reshape(N, H * W)
            k = min(self.pre_nms_top_n, H * W)
            # TODO(synk): for very large levels jax.lax.approx_max_k is a faster
            # (approximate) alternative to the exact sort-based top_k.
            top_scores, topk_idx = jax.lax.top_k(obj, k)                 # (N, k)
            reg_flat = b[:, :5].reshape(N, 5, H * W)                     # native dtype
            reg_sel = jnp.take_along_axis(reg_flat, topk_idx[:, None, :], axis=2)
            inv_scale = 1.0 / float(scale)                               # feature -> image
            col = (topk_idx % W).astype(jnp.float32)
            row = (topk_idx // W).astype(jnp.float32)
            reg_parts.append(reg_sel)
            px_parts.append(col * inv_scale)
            py_parts.append(row * inv_scale)
            score_parts.append(top_scores.astype(jnp.float32))
            level_sizes.append(k)

        reg_cat = jnp.concatenate(reg_parts, axis=2)        # (N, 5, K_tot) native dtype
        px_cat = jnp.concatenate(px_parts, axis=1)
        py_cat = jnp.concatenate(py_parts, axis=1)
        scores_cat = jnp.concatenate(score_parts, axis=1)

        # ---- Stage 2 (single Pallas launch, all levels): decode + clip + mask.
        boxes_all, masked_all = decode_selected(
            reg_cat, px_cat, py_cat, scores_cat, base_size=self.base_size,
            image_size=image_size, score_thresh=self.score_thresh,
            min_size=self.min_size)

        # ---- Stage 3 (plain JAX): per-level post-NMS cap, cat_boxlist over levels,
        # select_over_all_levels.
        # TODO(synk): rotated-box NMS (boxlist_nms / cluster_nms) has no clean Pallas
        # equivalent (data-dependent polygon IoU); approximated by keeping the top
        # post_nms_top_n valid-scored proposals per level.
        boxes_lvl, scores_lvl = [], []
        off = 0
        for k in level_sizes:
            sl = masked_all[:, off:off + k]
            bl = boxes_all[:, :, off:off + k]
            kk = min(self.post_nms_top_n, k)
            s_top, idx = jax.lax.top_k(sl, kk)
            boxes_lvl.append(jnp.take_along_axis(bl, idx[:, None, :], axis=2))
            scores_lvl.append(s_top)
            off += k
        boxes = jnp.concatenate(boxes_lvl, axis=2)          # (N, 5, sum_kk)
        scores = jnp.concatenate(scores_lvl, axis=1)
        if len(objectness_list) > 1:                        # select_over_all_levels
            kf = min(self.fpn_post_nms_top_n, scores.shape[1])
            scores, idx = jax.lax.top_k(scores, kf)
            boxes = jnp.take_along_axis(boxes, idx[:, None, :], axis=2)
        # Only the tiny final result is converted to (N, K, 5).
        return jnp.transpose(boxes, (0, 2, 1)), scores


if __name__ == "__main__":
    key = jax.random.PRNGKey(0)
    N = 2
    level_shapes = [(16, 16), (8, 8)]          # two FPN levels, small demo sizes
    scales = (0.25, 0.125)                     # consistent with a 64x64 image
    image_size = (64, 64)                      # (width, height)

    objectness_list, box_regression_list = [], []
    for (H, W) in level_shapes:
        key, k1, k2 = jax.random.split(key, 3)
        objectness_list.append(jax.random.normal(k1, (N, 1, H, W), dtype=jnp.float32))
        # Regression kept in bf16 end-to-end (cast to f32 only inside the kernel).
        box_regression_list.append(
            (0.1 * jax.random.normal(k2, (N, 5, H, W), dtype=jnp.float32) + 0.1
             ).astype(jnp.bfloat16))

    post = RPNPostProcessorPallas(
        pre_nms_top_n=64, post_nms_top_n=32, nms_thresh=0.7, min_size=0.0,
        fpn_post_nms_top_n=48, base_size=64.0, scale_stack=scales, score_thresh=0.1)

    boxes, scores = post(image_size, objectness_list, box_regression_list)
    jax.block_until_ready((boxes, scores))
    assert boxes.shape == (N, 48, 5) and scores.shape == (N, 48)
    print("KERNEL_OK")
</pallas_src>

<mosaic_0001>
module attributes {stable_mosaic.version = 11 : i64} {
  func.func @_decode_select_kernel(%arg0: i32, %arg1: i32, %arg2: memref<1x5x128xbf16, #tpu.memory_space<vmem>>, %arg3: memref<1x3x128xf32, #tpu.memory_space<vmem>>, %arg4: memref<1x6x128xf32, #tpu.memory_space<vmem>>) attributes {dimension_semantics = [#tpu.dimension_semantics<parallel>, #tpu.dimension_semantics<parallel>], iteration_bounds = array<i64: 2, 1>, scalar_prefetch = 0 : i64, scratch_operands = 0 : i64, tpu.core_type = #tpu.core_type<tc>, window_params = [{transform_indices = @transform_0, window_bounds = array<i64: 1, 5, 128>}, {transform_indices = @transform_1, window_bounds = array<i64: 1, 3, 128>}, {transform_indices = @transform_2, window_bounds = array<i64: 1, 6, 128>}]} {
    %c0 = arith.constant 0 : index
    %c0_0 = arith.constant 0 : index
    %c0_1 = arith.constant 0 : index
    %0 = vector.load %arg3[%c0, %c0_0, %c0_1] : memref<1x3x128xf32, #tpu.memory_space<vmem>>, vector<1x1x128xf32>
    %1 = vector.shape_cast %0 : vector<1x1x128xf32> to vector<1x128xf32>
    %c0_2 = arith.constant 0 : index
    %c1 = arith.constant 1 : index
    %c0_3 = arith.constant 0 : index
    %2 = vector.load %arg3[%c0_2, %c1, %c0_3] : memref<1x3x128xf32, #tpu.memory_space<vmem>>, vector<1x1x128xf32>
    %3 = vector.shape_cast %2 : vector<1x1x128xf32> to vector<1x128xf32>
    %c0_4 = arith.constant 0 : index
    %c2 = arith.constant 2 : index
    %c0_5 = arith.constant 0 : index
    %4 = vector.load %arg3[%c0_4, %c2, %c0_5] : memref<1x3x128xf32, #tpu.memory_space<vmem>>, vector<1x1x128xf32>
    %5 = vector.shape_cast %4 : vector<1x1x128xf32> to vector<1x128xf32>
    %c0_6 = arith.constant 0 : index
    %c4 = arith.constant 4 : index
    %c0_7 = arith.constant 0 : index
    %6 = vector.load %arg2[%c0_6, %c4, %c0_7] : memref<1x5x128xbf16, #tpu.memory_space<vmem>>, vector<1x1x128xbf16>
    %7 = vector.shape_cast %6 : vector<1x1x128xbf16> to vector<1x128xbf16>
    %8 = arith.extf %7 : vector<1x128xbf16> to vector<1x128xf32>
    %c0_8 = arith.constant 0 : index
    %c4_9 = arith.constant 4 : index
    %c0_10 = arith.constant 0 : index
    %9 = vector.load %arg4[%c0_8, %c4_9, %c0_10] : memref<1x6x128xf32, #tpu.memory_space<vmem>>, vector<1x1x128xf32>
    %10 = vector.shape_cast %9 : vector<1x1x128xf32> to vector<1x128xf32>
    %11 = vector.shape_cast %8 : vector<1x128xf32> to vector<1x1x128xf32>
    tpu.vector_store %arg4[%c0_8, %c4_9, %c0_10], %11 {strides = array<i32>} : memref<1x6x128xf32, #tpu.memory_space<vmem>>, vector<1x1x128xf32>,
    %12 = math.cos %8 : vector<1x128xf32>
    %13 = math.sin %8 : vector<1x128xf32>
    %c0_11 = arith.constant 0 : index
    %c0_12 = arith.constant 0 : index
    %c0_13 = arith.constant 0 : index
    %14 = vector.load %arg2[%c0_11, %c0_12, %c0_13] : memref<1x5x128xbf16, #tpu.memory_space<vmem>>, vector<1x1x128xbf16>
    %15 = vector.shape_cast %14 : vector<1x1x128xbf16> to vector<1x128xbf16>
    %16 = arith.extf %15 : vector<1x128xbf16> to vector<1x128xf32>
    %cst = arith.constant 6.400000e+01 : f32
    %17 = vector.broadcast %cst : f32 to vector<1x128xf32>
    %18 = arith.mulf %16, %17 : vector<1x128xf32>
    %c0_14 = arith.constant 0 : index
    %c2_15 = arith.constant 2 : index
    %c0_16 = arith.constant 0 : index
    %19 = vector.load %arg2[%c0_14, %c2_15, %c0_16] : memref<1x5x128xbf16, #tpu.memory_space<vmem>>, vector<1x1x128xbf16>
    %20 = vector.shape_cast %19 : vector<1x1x128xbf16> to vector<1x128xbf16>
    %21 = arith.extf %20 : vector<1x128xbf16> to vector<1x128xf32>
    %cst_17 = arith.constant 6.400000e+01 : f32
    %22 = vector.broadcast %cst_17 : f32 to vector<1x128xf32>
    %23 = arith.mulf %21, %22 : vector<1x128xf32>
    %24 = arith.addf %18, %23 : vector<1x128xf32>
    %c0_18 = arith.constant 0 : index
    %c3 = arith.constant 3 : index
    %c0_19 = arith.constant 0 : index
    %25 = vector.load %arg4[%c0_18, %c3, %c0_19] : memref<1x6x128xf32, #tpu.memory_space<vmem>>, vector<1x1x128xf32>
    %26 = vector.shape_cast %25 : vector<1x1x128xf32> to vector<1x128xf32>
    %27 = vector.shape_cast %24 : vector<1x128xf32> to vector<1x1x128xf32>
    tpu.vector_store %arg4[%c0_18, %c3, %c0_19], %27 {strides = array<i32>} : memref<1x6x128xf32, #tpu.memory_space<vmem>>, vector<1x1x128xf32>,
    %28 = arith.subf %23, %18 : vector<1x128xf32>
    %cst_20 = arith.constant 5.000000e-01 : f32
    %29 = vector.broadcast %cst_20 : f32 to vector<1x128xf32>
    %30 = arith.mulf %29, %28 : vector<1x128xf32>
    %c0_21 = arith.constant 0 : index
    %c1_22 = arith.constant 1 : index
    %c0_23 = arith.constant 0 : index
    %31 = vector.load %arg2[%c0_21, %c1_22, %c0_23] : memref<1x5x128xbf16, #tpu.memory_space<vmem>>, vector<1x1x128xbf16>
    %32 = vector.shape_cast %31 : vector<1x1x128xbf16> to vector<1x128xbf16>
    %33 = arith.extf %32 : vector<1x128xbf16> to vector<1x128xf32>
    %cst_24 = arith.constant 6.400000e+01 : f32
    %34 = vector.broadcast %cst_24 : f32 to vector<1x128xf32>
    %35 = arith.mulf %33, %34 : vector<1x128xf32>
    %c0_25 = arith.constant 0 : index
    %c3_26 = arith.constant 3 : index
    %c0_27 = arith.constant 0 : index
    %36 = vector.load %arg2[%c0_25, %c3_26, %c0_27] : memref<1x5x128xbf16, #tpu.memory_space<vmem>>, vector<1x1x128xbf16>
    %37 = vector.shape_cast %36 : vector<1x1x128xbf16> to vector<1x128xbf16>
    %38 = arith.extf %37 : vector<1x128xbf16> to vector<1x128xf32>
    %cst_28 = arith.constant 6.400000e+01 : f32
    %39 = vector.broadcast %cst_28 : f32 to vector<1x128xf32>
    %40 = arith.mulf %38, %39 : vector<1x128xf32>
    %41 = arith.addf %40, %35 : vector<1x128xf32>
    %c0_29 = arith.constant 0 : index
    %c2_30 = arith.constant 2 : index
    %c0_31 = arith.constant 0 : index
    %42 = vector.load %arg4[%c0_29, %c2_30, %c0_31] : memref<1x6x128xf32, #tpu.memory_space<vmem>>, vector<1x1x128xf32>
    %43 = vector.shape_cast %42 : vector<1x1x128xf32> to vector<1x128xf32>
    %44 = vector.shape_cast %41 : vector<1x128xf32> to vector<1x1x128xf32>
    tpu.vector_store %arg4[%c0_29, %c2_30, %c0_31], %44 {strides = array<i32>} : memref<1x6x128xf32, #tpu.memory_space<vmem>>, vector<1x1x128xf32>,
    %45 = arith.subf %35, %40 : vector<1x128xf32>
    %cst_32 = arith.constant 5.000000e-01 : f32
    %46 = vector.broadcast %cst_32 : f32 to vector<1x128xf32>
    %47 = arith.mulf %46, %45 : vector<1x128xf32>
    %48 = arith.mulf %47, %12 : vector<1x128xf32>
    %49 = arith.addf %1, %48 : vector<1x128xf32>
    %50 = arith.mulf %30, %13 : vector<1x128xf32>
    %51 = arith.subf %49, %50 : vector<1x128xf32>
    %52 = arith.mulf %47, %13 : vector<1x128xf32>
    %53 = arith.addf %3, %52 : vector<1x128xf32>
    %54 = arith.mulf %30, %12 : vector<1x128xf32>
    %55 = arith.addf %53, %54 : vector<1x128xf32>
    %cst_33 = arith.constant 0.000000e+00 : f32
    %cst_34 = arith.constant 6.300000e+01 : f32
    %56 = vector.broadcast %cst_33 : f32 to vector<1x128xf32>
    %57 = arith.maximumf %56, %51 : vector<1x128xf32>
    %58 = vector.broadcast %cst_34 : f32 to vector<1x128xf32>
    %59 = arith.minimumf %58, %57 : vector<1x128xf32>
    %c0_35 = arith.constant 0 : index
    %c0_36 = arith.constant 0 : index
    %c0_37 = arith.constant 0 : index
    %60 = vector.load %arg4[%c0_35, %c0_36, %c0_37] : memref<1x6x128xf32, #tpu.memory_space<vmem>>, vector<1x1x128xf32>
    %61 = vector.shape_cast %60 : vector<1x1x128xf32> to vector<1x128xf32>
    %62 = vector.shape_cast %59 : vector<1x128xf32> to vector<1x1x128xf32>
    tpu.vector_store %arg4[%c0_35, %c0_36, %c0_37], %62 {strides = array<i32>} : memref<1x6x128xf32, #tpu.memory_space<vmem>>, vector<1x1x128xf32>,
    %cst_38 = arith.constant 0.000000e+00 : f32
    %cst_39 = arith.constant 6.300000e+01 : f32
    %63 = vector.broadcast %cst_38 : f32 to vector<1x128xf32>
    %64 = arith.maximumf %63, %55 : vector<1x128xf32>
    %65 = vector.broadcast %cst_39 : f32 to vector<1x128xf32>
    %66 = arith.minimumf %65, %64 : vector<1x128xf32>
    %c0_40 = arith.constant 0 : index
    %c1_41 = arith.constant 1 : index
    %c0_42 = arith.constant 0 : index
    %67 = vector.load %arg4[%c0_40, %c1_41, %c0_42] : memref<1x6x128xf32, #tpu.memory_space<vmem>>, vector<1x1x128xf32>
    %68 = vector.shape_cast %67 : vector<1x1x128xf32> to vector<1x128xf32>
    %69 = vector.shape_cast %66 : vector<1x128xf32> to vector<1x1x128xf32>
    tpu.vector_store %arg4[%c0_40, %c1_41, %c0_42], %69 {strides = array<i32>} : memref<1x6x128xf32, #tpu.memory_space<vmem>>, vector<1x1x128xf32>,
    %cst_43 = arith.constant 1.000000e-01 : f32
    %70 = vector.broadcast %cst_43 : f32 to vector<1x128xf32>
    %71 = arith.cmpf ogt, %5, %70 : vector<1x128xf32>
    %cst_44 = arith.constant 0.000000e+00 : f32
    %72 = vector.broadcast %cst_44 : f32 to vector<1x128xf32>
    %73 = arith.cmpf oge, %41, %72 : vector<1x128xf32>
    %74 = arith.andi %71, %73 : vector<1x128xi1>
    %cst_45 = arith.constant 0.000000e+00 : f32
    %75 = vector.broadcast %cst_45 : f32 to vector<1x128xf32>
    %76 = arith.cmpf oge, %24, %75 : vector<1x128xf32>
    %77 = arith.andi %74, %76 : vector<1x128xi1>
    %cst_46 = arith.constant 0xFF800000 : f32
    %78 = vector.broadcast %cst_46 : f32 to vector<1x128xf32>
    %79 = arith.select %77, %5, %78 : vector<1x128xi1>, vector<1x128xf32>
    %c0_47 = arith.constant 0 : index
    %c5 = arith.constant 5 : index
    %c0_48 = arith.constant 0 : index
    %80 = vector.load %arg4[%c0_47, %c5, %c0_48] : memref<1x6x128xf32, #tpu.memory_space<vmem>>, vector<1x1x128xf32>
    %81 = vector.shape_cast %80 : vector<1x1x128xf32> to vector<1x128xf32>
    %82 = vector.shape_cast %79 : vector<1x128xf32> to vector<1x1x128xf32>
    tpu.vector_store %arg4[%c0_47, %c5, %c0_48], %82 {strides = array<i32>} : memref<1x6x128xf32, #tpu.memory_space<vmem>>, vector<1x1x128xf32>,
    return
  }
  func.func @transform_0(%arg0: i32, %arg1: i32) -> (i32, i32, i32) {
    %c0_i32 = arith.constant 0 : i32
    %c0_i32_0 = arith.constant 0 : i32
    return %arg0, %c0_i32, %arg1 : i32, i32, i32
  }
  func.func @transform_1(%arg0: i32, %arg1: i32) -> (i32, i32, i32) {
    %c0_i32 = arith.constant 0 : i32
    %c0_i32_0 = arith.constant 0 : i32
    return %arg0, %c0_i32, %arg1 : i32, i32, i32
  }
  func.func @transform_2(%arg0: i32, %arg1: i32) -> (i32, i32, i32) {
    %c0_i32 = arith.constant 0 : i32
    %c0_i32_0 = arith.constant 0 : i32
    return %arg0, %c0_i32, %arg1 : i32, i32, i32
  }
}

</mosaic_0001>

<llo_original>
// kernel: tpu_custom_call.1
$region0: #{tpu_custom_call.1}
  #allocation0 [shape = 'u32[]', space=smem, size = 0x4, offset = 0x4, fixed_abs, tag = 'smem constant byte address 0x4 - core index']
  #allocation1 [shape = 'u32[72,128]{1,0:T(1,128)}', space=vmem, size = 0x9000, scoped, tag = 'internal scratch']
  %s0 = inlined_call_operand.vmem [shape: bf16[2,5,128], index: 0, kind: input, shape index: {}]
  %s1 = inlined_call_operand.vmem [shape: f32[2,3,128], index: 1, kind: input, shape index: {}]
  %s2 = inlined_call_operand.vmem [shape: f32[2,6,128], index: 2, kind: output, shape index: {}]
  %s3 = sld [smem:[#allocation0]]
  $region41: #{tpu_custom_call.1} parent=0
    _
  %s5 = ssub.s32 1, %s3
  %s6 = scalar_select 0, %s5, %s3
  loop: start=0, step=1, limit=4
  $region2: #{tpu_custom_call.1} parent=0 // loop_pre_header
    _
  $region3: #{tpu_custom_call.1} parent=0 // loop_header
    %s8 = sphi 0, %s12
    %p9 = scmp.ge.s32.totalorder %s8, 4
    %s15 = sphi 0, %s27
    %s16 = sphi 0, %s23
    %s17 = sphi 0, %s15
    %s18 = sphi 0, %s16
    %s19 = sphi 0, %s17
    %s20 = sphi 0, %s18
    %s32 = sphi 0, %s34
    %s35 = sphi 0, %s32
    %s36 = sphi 0, %s35
    %s52 = sphi 0, %s36
    %s60 = sphi 0, %s62
    %s63 = sphi 0, %s60
    %s64 = sphi 0, %s63
    %s80 = sphi 0, %s64
    %s88 = sphi 0, %s90
    %s91 = sphi 0, %s88
    %s92 = sphi 0, %s91
    %s108 = sphi 0, %s92
  $region4: #{tpu_custom_call.1} parent=0 // loop_header_branch
    %11 = sbr.rel (%p9) target = $region8
  $region5: #{tpu_custom_call.1} parent=0 // loop_body
    %s13 = ssub.s32 %s8, 1
    %s14 = ssub.s32 %s8, 2
    %s21 = sadd.s32 1, %s16
    %p22 = scmp.ge.s32.totalorder %s21, 1
    %s23 = scalar_select %p22, 0, %s21
    %s24 = sadd.s32 1, %s15
    %s25 = scalar_select %p22, %s24, %s15
    %p26 = scmp.ge.s32.totalorder %s25, 2
    %s27 = scalar_select %p26, 0, %s25
    %s28 = ssub.s32 %s15, %s27
    %s29 = ssub.s32 %s16, %s23
    %s30 = sor.u32 %s28, %s29
    %p31 = scmp.eq.s32.totalorder %s30, 0
    %s33 = sadd.s32 %s32, 1
    %s34 = scalar_select %p31, %s32, %s33
    %p37 = pneg %p31
    %p38 = scmp.eq.s32.totalorder %s8, 1
    %p39 = por %p37, %p38
    %p40 = scmp.ne.s32.totalorder %s32, %s35
    %p41 = scmp.eq.s32.totalorder %s8, 0
    %p42 = por %p40, %p41
    %p43 = scmp.ne.s32.totalorder %s32, %s35
    %p44 = scmp.eq.s32.totalorder %s13, 1
    %p45 = por %p43, %p44
    %p46 = scmp.ne.s32.totalorder %s35, %s36
    %p47 = scmp.eq.s32.totalorder %s13, 0
    %p48 = por %p46, %p47
    %p49 = scmp.ne.s32.totalorder %s35, %s36
    %p50 = scmp.eq.s32.totalorder %s14, 1
    %p51 = por %p49, %p50
    %p53 = scmp.ne.s32.totalorder %s36, %s52
    %p54 = scmp.eq.s32.totalorder %s14, 0
    %p55 = por %p53, %p54
    %s56 = ssub.s32 %s15, %s27
    %s57 = ssub.s32 %s16, %s23
    %s58 = sor.u32 %s56, %s57
    %p59 = scmp.eq.s32.totalorder %s58, 0
    %s61 = sadd.s32 %s60, 1
    %s62 = scalar_select %p59, %s60, %s61
    %p65 = pneg %p59
    %p66 = scmp.eq.s32.totalorder %s8, 1
    %p67 = por %p65, %p66
    %p68 = scmp.ne.s32.totalorder %s60, %s63
    %p69 = scmp.eq.s32.totalorder %s8, 0
    %p70 = por %p68, %p69
    %p71 = scmp.ne.s32.totalorder %s60, %s63
    %p72 = scmp.eq.s32.totalorder %s13, 1
    %p73 = por %p71, %p72
    %p74 = scmp.ne.s32.totalorder %s63, %s64
    %p75 = scmp.eq.s32.totalorder %s13, 0
    %p76 = por %p74, %p75
    %p77 = scmp.ne.s32.totalorder %s63, %s64
    %p78 = scmp.eq.s32.totalorder %s14, 1
    %p79 = por %p77, %p78
    %p81 = scmp.ne.s32.totalorder %s64, %s80
    %p82 = scmp.eq.s32.totalorder %s14, 0
    %p83 = por %p81, %p82
    %s84 = ssub.s32 %s15, %s27
    %s85 = ssub.s32 %s16, %s23
    %s86 = sor.u32 %s84, %s85
    %p87 = scmp.eq.s32.totalorder %s86, 0
    %s89 = sadd.s32 %s88, 1
    %s90 = scalar_select %p87, %s88, %s89
    %p93 = pneg %p87
    %p94 = scmp.eq.s32.totalorder %s8, 1
    %p95 = por %p93, %p94
    %p96 = scmp.ne.s32.totalorder %s88, %s91
    %p97 = scmp.eq.s32.totalorder %s8, 0
    %p98 = por %p96, %p97
    %p99 = scmp.ne.s32.totalorder %s88, %s91
    %p100 = scmp.eq.s32.totalorder %s13, 1
    %p101 = por %p99, %p100
    %p102 = scmp.ne.s32.totalorder %s91, %s92
    %p103 = scmp.eq.s32.totalorder %s13, 0
    %p104 = por %p102, %p103
    %p105 = scmp.ne.s32.totalorder %s91, %s92
    %p106 = scmp.eq.s32.totalorder %s14, 1
    %p107 = por %p105, %p106
    %p109 = scmp.ne.s32.totalorder %s92, %s108
    %p110 = scmp.eq.s32.totalorder %s14, 0
    %p111 = por %p109, %p110
    %p112 = scmp.le.s32.totalorder 1, %s8
    %p113 = scmp.lt.s32.totalorder %s8, 3
    %p114 = pnand %p112, %p113
    %p115 = pneg %p114
    // Predicated region
    $region9: #{tpu_custom_call.1} parent=5 // pred_check
      _
    $region10: #{tpu_custom_call.1} parent=5 // pred_check_branch
      %117 = sbr.rel (%p114) target = $region12
    $region11: #{tpu_custom_call.1} parent=5 // pred_region
      %s118 = ssub.s32 %s8, 1
    $region12: #{tpu_custom_call.1} parent=5 // pred_fallthru
      _
    %p119 = scmp.lt.s32.totalorder %s8, 2
    // Predicated region
    $region13: #{tpu_custom_call.1} parent=5 // pred_check
      %p120 = pneg %p119
    $region14: #{tpu_custom_call.1} parent=5 // pred_check_branch
      %122 = sbr.rel (%p120) target = $region16
    $region15: #{tpu_custom_call.1} parent=5 // pred_region
      // Predicated region
      $region17: #{tpu_custom_call.1} parent=15 // pred_check
        %p123 = pneg %p42
      $region18: #{tpu_custom_call.1} parent=15 // pred_check_branch
        %125 = sbr.rel (%p123) target = $region20
      $region19: #{tpu_custom_call.1} parent=15 // pred_region
        %p126 = scmp.lt.s32.totalorder %s15, 1
        %s127 = scalar_select %p126, %s15, 1
        %p128 = scmp.lt.s32.totalorder %s16, 0
        %s129 = scalar_select %p128, %s16, 0
        %s130 = sadd.s32 %s129, %s127
        %s131 = smul.addr %s130, 4
        %s132 = scalar_lea.vmem %s0, %s131
      $region20: #{tpu_custom_call.1} parent=15 // pred_fallthru
        _
      // Predicated region
      $region21: #{tpu_custom_call.1} parent=15 // pred_check
        %p133 = pneg %p70
      $region22: #{tpu_custom_call.1} parent=15 // pred_check_branch
        %135 = sbr.rel (%p133) target = $region24
      $region23: #{tpu_custom_call.1} parent=15 // pred_region
        %p136 = scmp.lt.s32.totalorder %s15, 1
        %s137 = scalar_select %p136, %s15, 1
        %p138 = scmp.lt.s32.totalorder %s16, 0
        %s139 = scalar_select %p138, %s16, 0
        %s140 = sadd.s32 %s139, %s137
        %s141 = smul.addr %s140, 4
        %s142 = scalar_lea.vmem %s1, %s141
      $region24: #{tpu_custom_call.1} parent=15 // pred_fallthru
        _
    $region16: #{tpu_custom_call.1} parent=5 // pred_fallthru
      _
    %p143 = scmp.le.s32.totalorder 1, %s8
    %p144 = scmp.lt.s32.totalorder %s8, 3
    %p145 = pnand %p143, %p144
    %p146 = pneg %p145
    // Predicated region
    $region25: #{tpu_custom_call.1} parent=5 // pred_check
      _
    $region26: #{tpu_custom_call.1} parent=5 // pred_check_branch
      %148 = sbr.rel (%p145) target = $region28
    $region27: #{tpu_custom_call.1} parent=5 // pred_region
      %s149 = ssub.s32 %s8, 1
      %p150 = scmp.lt.s32.totalorder %s17, 1
      %s151 = scalar_select %p150, %s17, 1
      %p152 = scmp.lt.s32.totalorder %s18, 0
      %s153 = scalar_select %p152, %s18, 0
      %s154 = sadd.s32 %s153, %s151
      %s155 = smul.addr %s154, 4
      %s156 = scalar_lea.vmem %s0, %s155
      %p157 = pneg %p48
      %p158 = pneg %p45
      %p159 = scmp.lt.s32.totalorder %s17, 1
      %s160 = scalar_select %p159, %s17, 1
      %p161 = scmp.lt.s32.totalorder %s18, 0
      %s162 = scalar_select %p161, %s18, 0
      %s163 = sadd.s32 %s162, %s160
      %s164 = smul.addr %s163, 4
      %s165 = scalar_lea.vmem %s1, %s164
      %p166 = pneg %p76
      %p167 = pneg %p73
      %p168 = pneg %p104
      %p169 = pneg %p101
      %p170 = scmp.lt.s32.totalorder %s17, 1
      %s171 = scalar_select %p170, %s17, 1
      %p172 = scmp.lt.s32.totalorder %s18, 0
      %s173 = scalar_select %p172, %s18, 0
      %s174 = sadd.s32 %s173, %s171
      %s175 = smul.addr %s174, 8
      %s176 = scalar_lea.vmem %s2, %s175
      %p177 = scmp.lt.s32.totalorder %s17, 1
      %s178 = scalar_select %p177, %s17, 1
      %p179 = scmp.lt.s32.totalorder %s18, 0
      %s180 = scalar_select %p179, %s18, 0
      %s181 = sadd.s32 %s180, %s178
      %s182 = smul.addr %s181, 4
      %s183 = scalar_lea.vmem %s0, %s182
      %p184 = scmp.lt.s32.totalorder %s17, 1
      %s185 = scalar_select %p184, %s17, 1
      %p186 = scmp.lt.s32.totalorder %s18, 0
      %s187 = scalar_select %p186, %s18, 0
      %s188 = sadd.s32 %s187, %s185
      %s189 = smul.addr %s188, 4
      %s190 = scalar_lea.vmem %s1, %s189
      %p191 = scmp.lt.s32.totalorder %s17, 1
      %s192 = scalar_select %p191, %s17, 1
      %p193 = scmp.lt.s32.totalorder %s18, 0
      %s194 = scalar_select %p193, %s18, 0
      %s195 = sadd.s32 %s194, %s192
      %s196 = smul.addr %s195, 8
      %s197 = scalar_lea.vmem %s2, %s196
      %v198 = vld [vmem:[%s190] sm:$0x1]
      %v199 = vld [vmem:[%s190 + $0x1] sm:$0x1]
      %v200 = vld [vmem:[%s190 + $0x2] sm:$0x1]
      %v201 = vld [vmem:[%s183] sm:$0x4]
      %v202 = vunpack.c.l.bf16 %v201
      %203 = vst [vmem:[%s197] sm:$0x10] %v202
      %v204 = vand.u32 2147483647, %v202
      %vm205 = vcmp.le.f32.partialorder %v204, 0.7853982
      %vm206 = vcmp.lt.s32.totalorder %v202, 0
      %v207 = vand.u32 %v202, 2139095040
      %v208 = vshrl.u32 %v207, 23
      %v209 = vsub.s32 %v208, 127
      %v210 = vand.u32 2147483647, %v202
      %v211 = vand.u32 %v210, 8388607
      %v212 = vor.u32 %v211, 8388608
      %v213 = vsub.s32 0, %v212
      %v214 = vadd.s32 %v209, 1
      %vm215 = vcmp.gt.s32.totalorder %v214, 0
      %v216 = vsel %vm215, %v214, 0
      %v217 = vshrl.u32 %v216, 5
      %v218 = vand.u32 %v216, 31
      %v219 = vsub.s32 32, %v218
      %v220 = vshrl.u32 683565275, %v219
      %v221 = vshll.u32 683565275, %v218
      %v222 = vshrl.u32 2475754826, %v219
      %v223 = vor.u32 %v221, %v222
      %v224 = vshll.u32 2475754826, %v218
      %v225 = vshrl.u32 2131351028, %v219
      %v226 = vor.u32 %v224, %v225
      %v227 = vshll.u32 2131351028, %v218
      %v228 = vshrl.u32 2102212464, %v219
      %v229 = vor.u32 %v227, %v228
      %v230 = vshll.u32 2102212464, %v218
      %v231 = vshrl.u32 920167782, %v219
      %v232 = vor.u32 %v230, %v231
      %v233 = vshll.u32 920167782, %v218
      %v234 = vshrl.u32 1326507024, %v219
      %v235 = vor.u32 %v233, %v234
      %vm236 = vcmp.lt.s32.totalorder %v217, 1
      %vm237 = vcmp.lt.s32.totalorder %v217, 2
      %vm238 = vcmp.lt.s32.totalorder %v217, 3
      %vm239 = vcmp.lt.s32.totalorder %v217, 4
      %v240 = vsel %vm236, %v220, %v223
      %v241 = vsel %vm239, %v229, 2102212464
      %v242 = vsel %vm238, %v226, %v241
      %v243 = vsel %vm237, %v240, %v242
      %v244 = vsel %vm236, %v223, %v226
      %v245 = vsel %vm239, %v232, 920167782
      %v246 = vsel %vm238, %v229, %v245
      %v247 = vsel %vm237, %v244, %v246
      %v248 = vsel %vm236, %v226, %v229
      %v249 = vsel %vm239, %v235, 1326507024
      %v250 = vsel %vm238, %v232, %v249
      %v251 = vsel %vm237, %v248, %v250
      %v252 = vshll.u32 %v212, 8
      %v253 = vand.u32 %v252, 65535
      %v254 = vshrl.u32 %v252, 16
      %v255 = vand.u32 %v251, 65535
      %v256 = vshrl.u32 %v251, 16
      %v257 = vmul.u32 %v253, %v255
      %v258 = vmul.u32 %v253, %v256
      %v259 = vmul.u32 %v254, %v255
      %v260 = vmul.u32 %v254, %v256
      %v261 = vshll.u32 %v258, 16
      %v262 = vshrl.u32 %v258, 16
      %v263 = vshll.u32 %v259, 16
      %v264 = vshrl.u32 %v259, 16
      %vm265 = vc.u32 %v257, %v261
      %v266 = vsel %vm265, 1, 0
      %v267 = vadd.s32 %v257, %v261
      %v268 = vadd.s32 %v260, %v266
      %vm269 = vc.u32 %v267, %v263
      %v270 = vsel %vm269, 1, 0
      %v271 = vadd.s32 %v267, %v263
      %v272 = vadd.s32 %v268, %v270
      %v273 = vadd.s32 %v272, %v262
      %v274 = vadd.s32 %v273, %v264
      %v275 = vand.u32 %v252, 65535
      %v276 = vshrl.u32 %v252, 16
      %v277 = vand.u32 %v247, 65535
      %v278 = vshrl.u32 %v247, 16
      %v279 = vmul.u32 %v275, %v277
      %v280 = vmul.u32 %v275, %v278
      %v281 = vmul.u32 %v276, %v277
      %v282 = vmul.u32 %v276, %v278
      %v283 = vshll.u32 %v280, 16
      %v284 = vshrl.u32 %v280, 16
      %v285 = vshll.u32 %v281, 16
      %v286 = vshrl.u32 %v281, 16
      %vm287 = vc.u32 %v279, %v283
      %v288 = vsel %vm287, 1, 0
      %v289 = vadd.s32 %v279, %v283
      %v290 = vadd.s32 %v282, %v288
      %vm291 = vc.u32 %v289, %v285
      %v292 = vsel %vm291, 1, 0
      %v293 = vadd.s32 %v289, %v285
      %v294 = vadd.s32 %v290, %v292
      %v295 = vadd.s32 %v294, %v284
      %v296 = vadd.s32 %v295, %v286
      %v297 = vmul.u32 %v252, %v243
      %v298 = vadd.s32 %v274, %v293
      %vm299 = vc.u32 %v274, %v293
      %v300 = vadd.s32 %v296, 1
      %v301 = vsel %vm299, %v300, %v296
      %v302 = vadd.s32 %v297, %v301
      %v303 = vadd.s32 %v302, 536870912
      %v304 = vshrl.u32 %v303, 30
      %v305 = vshll.u32 %v304, 30
      %v306 = vsub.s32 %v302, %v305
      %vm307 = vcmp.lt.s32.totalorder %v306, 0
      %v308 = vsub.s32 0, %v306
      %v309 = vsel %vm307, %v308, %v306
      %v310 = vclz %v309
      %v311 = vsub.s32 %v310, 2
      %vm312 = vcmp.gt.s32.totalorder 0, %v311
      %v313 = vsel %vm312, 0, %v311
      %v314 = vsub.s32 32, %v313
      %v315 = vshll.u32 %v306, %v313
      %v316 = vshrl.u32 %v298, %v314
      %v317 = vor.u32 %v315, %v316
      %v318 = vsub.s32 4294967266, %v313
      %v319 = vadd.s32 %v318, 127
      %v320 = vshll.u32 %v319, 23
      %v321 = vor.u32 4788187, %v320
      %v322 = vand.u32 2147483647, %v321
      %v324 = vcvt.s32.f32 %v317
      %v325 = vmul.f32 %v324, %v322
      %v326 = vxor.u32 %v325, 2147483648
      %v327 = vsel %vm206, %v326, %v325
      %v328 = vsub.s32 4, %v304
      %v329 = vsel %vm206, %v328, %v304
      %v330 = vsel %vm205, %v202, %v327
      %v331 = vsel %vm205, 0, %v329
      %v332 = vmul.f32 %v330, %v330
      %v333 = vmul.f32 %v332, -0.001358992
      %v334 = vadd.f32 %v333, 0.041655596
      %v335 = vmul.f32 %v332, %v334
      %v336 = vadd.f32 %v335, -0.4999988
      %v337 = vmul.f32 %v332, %v336
      %v338 = vadd.f32 1.0, %v337
      %v339 = vmul.f32 %v330, %v330
      %v340 = vmul.f32 %v339, -0.00019511016
      %v341 = vadd.f32 %v340, 0.008332121
      %v342 = vmul.f32 %v339, %v341
      %v343 = vadd.f32 %v342, -0.16666654
      %v344 = vmul.f32 %v339, %v343
      %v345 = vadd.f32 %v344, 1.0
      %v346 = vmul.f32 %v345, %v330
      %vm347 = vweird.f32 %v202
      %v348 = vand.u32 %v331, 3
      %vm349 = vcmp.lt.s32.totalorder %v348, 2
      %vm350 = vcmp.eq.s32.totalorder %v348, 0
      %v351 = vxor.u32 %v346, 2147483648
      %v352 = vsel %vm350, %v338, %v351
      %vm353 = vcmp.eq.s32.totalorder %v348, 2
      %v354 = vxor.u32 %v338, 2147483648
      %v355 = vsel %vm353, %v354, %v346
      %v356 = vsel %vm349, %v352, %v355
      %v357 = vsel %vm347, nan, %v356
      %v358 = vand.u32 2147483647, %v202
      %vm359 = vcmp.le.f32.partialorder %v358, 0.7853982
      %vm360 = vcmp.lt.s32.totalorder %v202, 0
      %v361 = vand.u32 %v202, 2139095040
      %v362 = vshrl.u32 %v361, 23
      %v363 = vsub.s32 %v362, 127
      %v364 = vand.u32 2147483647, %v202
      %v365 = vand.u32 %v364, 8388607
      %v366 = vor.u32 %v365, 8388608
      %v367 = vsub.s32 0, %v366
      %v368 = vadd.s32 %v363, 1
      %vm369 = vcmp.gt.s32.totalorder %v368, 0
      %v370 = vsel %vm369, %v368, 0
      %v371 = vshrl.u32 %v370, 5
      %v372 = vand.u32 %v370, 31
      %v373 = vsub.s32 32, %v372
      %v374 = vshrl.u32 683565275, %v373
      %v375 = vshll.u32 683565275, %v372
      %v376 = vshrl.u32 2475754826, %v373
      %v377 = vor.u32 %v375, %v376
      %v378 = vshll.u32 2475754826, %v372
      %v379 = vshrl.u32 2131351028, %v373
      %v380 = vor.u32 %v378, %v379
      %v381 = vshll.u32 2131351028, %v372
      %v382 = vshrl.u32 2102212464, %v373
      %v383 = vor.u32 %v381, %v382
      %v384 = vshll.u32 2102212464, %v372
      %v385 = vshrl.u32 920167782, %v373
      %v386 = vor.u32 %v384, %v385
      %v387 = vshll.u32 920167782, %v372
      %v388 = vshrl.u32 1326507024, %v373
      %v389 = vor.u32 %v387, %v388
      %vm390 = vcmp.lt.s32.totalorder %v371, 1
      %vm391 = vcmp.lt.s32.totalorder %v371, 2
      %vm392 = vcmp.lt.s32.totalorder %v371, 3
      %vm393 = vcmp.lt.s32.totalorder %v371, 4
      %v394 = vsel %vm390, %v374, %v377
      %v395 = vsel %vm393, %v383, 2102212464
      %v396 = vsel %vm392, %v380, %v395
      %v397 = vsel %vm391, %v394, %v396
      %v398 = vsel %vm390, %v377, %v380
      %v399 = vsel %vm393, %v386, 920167782
      %v400 = vsel %vm392, %v383, %v399
      %v401 = vsel %vm391, %v398, %v400
      %v402 = vsel %vm390, %v380, %v383
      %v403 = vsel %vm393, %v389, 1326507024
      %v404 = vsel %vm392, %v386, %v403
      %v405 = vsel %vm391, %v402, %v404
      %v406 = vshll.u32 %v366, 8
      %v407 = vand.u32 %v406, 65535
      %v408 = vshrl.u32 %v406, 16
      %v409 = vand.u32 %v405, 65535
      %v410 = vshrl.u32 %v405, 16
      %v411 = vmul.u32 %v407, %v409
      %v412 = vmul.u32 %v407, %v410
      %v413 = vmul.u32 %v408, %v409
      %v414 = vmul.u32 %v408, %v410
      %v415 = vshll.u32 %v412, 16
      %v416 = vshrl.u32 %v412, 16
      %v417 = vshll.u32 %v413, 16
      %v418 = vshrl.u32 %v413, 16
      %vm419 = vc.u32 %v411, %v415
      %v420 = vsel %vm419, 1, 0
      %v421 = vadd.s32 %v411, %v415
      %v422 = vadd.s32 %v414, %v420
      %vm423 = vc.u32 %v421, %v417
      %v424 = vsel %vm423, 1, 0
      %v425 = vadd.s32 %v421, %v417
      %v426 = vadd.s32 %v422, %v424
      %v427 = vadd.s32 %v426, %v416
      %v428 = vadd.s32 %v427, %v418
      %v429 = vand.u32 %v406, 65535
      %v430 = vshrl.u32 %v406, 16
      %v431 = vand.u32 %v401, 65535
      %v432 = vshrl.u32 %v401, 16
      %v433 = vmul.u32 %v429, %v431
      %v434 = vmul.u32 %v429, %v432
      %v435 = vmul.u32 %v430, %v431
      %v436 = vmul.u32 %v430, %v432
      %v437 = vshll.u32 %v434, 16
      %v438 = vshrl.u32 %v434, 16
      %v439 = vshll.u32 %v435, 16
      %v440 = vshrl.u32 %v435, 16
      %vm441 = vc.u32 %v433, %v437
      %v442 = vsel %vm441, 1, 0
      %v443 = vadd.s32 %v433, %v437
      %v444 = vadd.s32 %v436, %v442
      %vm445 = vc.u32 %v443, %v439
      %v446 = vsel %vm445, 1, 0
      %v447 = vadd.s32 %v443, %v439
      %v448 = vadd.s32 %v444, %v446
      %v449 = vadd.s32 %v448, %v438
      %v450 = vadd.s32 %v449, %v440
      %v451 = vmul.u32 %v406, %v397
      %v452 = vadd.s32 %v428, %v447
      %vm453 = vc.u32 %v428, %v447
      %v454 = vadd.s32 %v450, 1
      %v455 = vsel %vm453, %v454, %v450
      %v456 = vadd.s32 %v451, %v455
      %v457 = vadd.s32 %v456, 536870912
      %v458 = vshrl.u32 %v457, 30
      %v459 = vshll.u32 %v458, 30
      %v460 = vsub.s32 %v456, %v459
      %vm461 = vcmp.lt.s32.totalorder %v460, 0
      %v462 = vsub.s32 0, %v460
      %v463 = vsel %vm461, %v462, %v460
      %v464 = vclz %v463
      %v465 = vsub.s32 %v464, 2
      %vm466 = vcmp.gt.s32.totalorder 0, %v465
      %v467 = vsel %vm466, 0, %v465
      %v468 = vsub.s32 32, %v467
      %v469 = vshll.u32 %v460, %v467
      %v470 = vshrl.u32 %v452, %v468
      %v471 = vor.u32 %v469, %v470
      %v472 = vsub.s32 4294967266, %v467
      %v473 = vadd.s32 %v472, 127
      %v474 = vshll.u32 %v473, 23
      %v475 = vor.u32 4788187, %v474
      %v476 = vand.u32 2147483647, %v475
      %v478 = vcvt.s32.f32 %v471
      %v479 = vmul.f32 %v478, %v476
      %v480 = vxor.u32 %v479, 2147483648
      %v481 = vsel %vm360, %v480, %v479
      %v482 = vsub.s32 4, %v458
      %v483 = vsel %vm360, %v482, %v458
      %v484 = vsel %vm359, %v202, %v481
      %v485 = vsel %vm359, 0, %v483
      %v486 = vmul.f32 %v484, %v484
      %v487 = vmul.f32 %v486, -0.001358992
      %v488 = vadd.f32 %v487, 0.041655596
      %v489 = vmul.f32 %v486, %v488
      %v490 = vadd.f32 %v489, -0.4999988
      %v491 = vmul.f32 %v486, %v490
      %v492 = vadd.f32 1.0, %v491
      %v493 = vmul.f32 %v484, %v484
      %v494 = vmul.f32 %v493, -0.00019511016
      %v495 = vadd.f32 %v494, 0.008332121
      %v496 = vmul.f32 %v493, %v495
      %v497 = vadd.f32 %v496, -0.16666654
      %v498 = vmul.f32 %v493, %v497
      %v499 = vadd.f32 %v498, 1.0
      %v500 = vmul.f32 %v499, %v484
      %vm501 = vweird.f32 %v202
      %v502 = vadd.s32 %v485, 3
      %v503 = vand.u32 %v502, 3
      %vm504 = vcmp.lt.s32.totalorder %v503, 2
      %vm505 = vcmp.eq.s32.totalorder %v503, 0
      %v506 = vxor.u32 %v500, 2147483648
      %v507 = vsel %vm505, %v492, %v506
      %vm508 = vcmp.eq.s32.totalorder %v503, 2
      %v509 = vxor.u32 %v492, 2147483648
      %v510 = vsel %vm508, %v509, %v500
      %v511 = vsel %vm504, %v507, %v510
      %v512 = vsel %vm501, nan, %v511
      %v513 = vld [vmem:[%s183] sm:$0x1]
      %v514 = vunpack.c.l.bf16 %v513
      %v515 = vmul.f32 %v514, 64.0
      %v516 = vld [vmem:[%s183] sm:$0x2]
      %v517 = vunpack.c.l.bf16 %v516
      %v518 = vmul.f32 %v517, 64.0
      %v520 = vrot.slane %v518, 2
      %v522 = vadd.f32 %v515, %v520
      %523 = vst [vmem:[%s197 + $0x3] sm:$0x1] %v522
      %v525 = vrot.slane %v515, 6
      %v527 = vsub.f32 %v518, %v525
      %v528 = vmul.f32 %v527, 0.5
      %v529 = vld [vmem:[%s183] sm:$0x1]
      %v530 = vunpack.c.l.bf16 %v529
      %v531 = vmul.f32 %v530, 64.0
      %v532 = vld [vmem:[%s183] sm:$0x2]
      %v533 = vunpack.c.l.bf16 %v532
      %v534 = vmul.f32 %v533, 64.0
      %v536 = vrot.slane %v531, 6
      %v538 = vadd.f32 %v534, %v536
      %539 = vst [vmem:[%s197 - $0x1] sm:$0x8] %v538
      %v541 = vrot.slane %v534, 2
      %v543 = vsub.f32 %v531, %v541
      %v544 = vmul.f32 %v543, 0.5
      %v546 = vrot.slane %v357, 3
      %v548 = vmul.f32 %v544, %v546
      %v550 = vrot.slane %v548, 1
      %v552 = vadd.f32 %v198, %v550
      %v554 = vrot.slane %v512, 2
      %v556 = vmul.f32 %v528, %v554
      %v558 = vrot.slane %v556, 2
      %v560 = vsub.f32 %v552, %v558
      %v561 = vrot.slane %v512, 3
      %v563 = vmul.f32 %v544, %v561
      %v565 = vrot.slane %v563, 1
      %v567 = vadd.f32 %v199, %v565
      %v568 = vrot.slane %v357, 2
      %v570 = vmul.f32 %v528, %v568
      %v572 = vrot.slane %v570, 2
      %v574 = vadd.f32 %v567, %v572
      %v575 = vmax.f32 %v560, 0.0
      %v576 = vmin.f32 %v575, 63.0
      %577 = vst [vmem:[%s197] sm:$0x1] %v576
      %v578 = vmax.f32 %v574, 0.0
      %v579 = vmin.f32 %v578, 63.0
      %580 = vst [vmem:[%s197 + $0x1] sm:$0x1] %v579
      %vm581 = vcmp.gt.f32.partialorder %v200, 0.1
      %vm582 = vcmp.ge.f32.partialorder %v538, 0.0
      %v583 = vsel %vm582, 1, 0
      %v584 = vrot.slane %v583, 3
      %vm585 = vcmp.ne.s32.totalorder %v584, 0
      %vm586 = vmand %vm581, %vm585
      %vm587 = vcmp.ge.f32.partialorder %v522, 0.0
      %vm588 = vmand %vm586, %vm587
      %v589 = vsel %vm588, %v200, -inf
      %590 = vst [vmem:[%s197 + $0x5] sm:$0x1] %v589
      %p591 = scmp.lt.s32.totalorder %s17, 1
      %s592 = scalar_select %p591, %s17, 1
      %p593 = scmp.lt.s32.totalorder %s18, 0
      %s594 = scalar_select %p593, %s18, 0
      %s595 = sadd.s32 %s594, %s592
      %s596 = smul.addr %s595, 8
      %s597 = scalar_lea.vmem %s2, %s596
      // Predicated region
      $region29: #{tpu_custom_call.1} parent=27 // pred_check
        %p598 = pneg %p101
      $region30: #{tpu_custom_call.1} parent=27 // pred_check_branch
        %600 = sbr.rel (%p598) target = $region32
      $region31: #{tpu_custom_call.1} parent=27 // pred_region
        _
      $region32: #{tpu_custom_call.1} parent=27 // pred_fallthru
        _
    $region28: #{tpu_custom_call.1} parent=5 // pred_fallthru
      _
    %p601 = scmp.le.s32.totalorder 2, %s8
    // Predicated region
    $region33: #{tpu_custom_call.1} parent=5 // pred_check
      %p602 = pneg %p601
    $region34: #{tpu_custom_call.1} parent=5 // pred_check_branch
      %604 = sbr.rel (%p602) target = $region36
    $region35: #{tpu_custom_call.1} parent=5 // pred_region
      %s605 = ssub.s32 %s8, 2
      // Predicated region
      $region37: #{tpu_custom_call.1} parent=35 // pred_check
        %p606 = pneg %p107
      $region38: #{tpu_custom_call.1} parent=35 // pred_check_branch
        %608 = sbr.rel (%p606) target = $region40
      $region39: #{tpu_custom_call.1} parent=35 // pred_region
        %p609 = scmp.lt.s32.totalorder %s19, 1
        %s610 = scalar_select %p609, %s19, 1
        %p611 = scmp.lt.s32.totalorder %s20, 0
        %s612 = scalar_select %p611, %s20, 0
        %s613 = sadd.s32 %s612, %s610
        %s614 = smul.addr %s613, 8
        %s615 = scalar_lea.vmem %s2, %s614
      $region40: #{tpu_custom_call.1} parent=35 // pred_fallthru
        _
    $region36: #{tpu_custom_call.1} parent=5 // pred_fallthru
      _
  $region6: #{tpu_custom_call.1} parent=0 // loop_footer
    %s12 = sadd.s32 1, %s8
  $region7: #{tpu_custom_call.1} parent=0 // loop_footer_branch
    %7 = sbr.rel target = $region3
  $region8: #{tpu_custom_call.1} parent=0 // loop_exit
    _

</llo_original>
